<compile_context>
chip_gen: v5e
topology: v5e:2x2
jax: 0.10.0
libtpu: 0.0.40
codegen_flags: <defaults>
</compile_context>

<pallas_src>
import jax
import jax.numpy as jnp
from jax.experimental import pallas as pl
from jax.experimental.pallas import tpu as pltpu

LANE = 128      # vreg lane width  — feature dims padded to multiples of this
SUBLANE = 8     # vreg sublane cnt — batch tiles padded to multiples of this


def _round_up(n, m):
    return ((n + m - 1) // m) * m


def _sigmoid_f32(z):
    # Exact sigmoid in f32: exp() goes to the EUP, the divide to the VPU.
    # Neither unit is the bottleneck here, so no approximate reciprocal.
    return 1.0 / (1.0 + jnp.exp(-z))


def _fused_mlp_kernel(x_ref, *refs):
    """Fused forward for the whole MLP: h_{l+1} = sigmoid(h_l @ W_l + b_l).

    x_ref / weight refs are bf16 (MXU-native); accumulation, bias add and the
    sigmoid epilogue are f32.  Hidden activations live only in vregs/VMEM.
    """
    *param_refs, o_ref = refs
    n_layers = len(param_refs) // 2
    h_mxu = x_ref[...]                          # bf16 (tb, K_pad)
    act = None
    for l in range(n_layers):
        w = param_refs[2 * l][...]              # bf16 (K_l, N_l), N_l % 128 == 0
        b = param_refs[2 * l + 1][...]          # f32  (1, N_l)
        z = jnp.dot(h_mxu, w, preferred_element_type=jnp.float32) + b
        act = _sigmoid_f32(z)                   # f32
        if l + 1 < n_layers:
            h_mxu = act.astype(jnp.bfloat16)    # bf16 only as the next MXU input
    o_ref[...] = act.astype(o_ref.dtype)


def init_fc_params(layer_shapes, key):
    """Deterministic init matching nn.Linear shapes: W (out, in), b (out,)."""
    params = []
    for (n_in, n_out) in layer_shapes:
        key, kw, kb = jax.random.split(key, 3)
        bound = 1.0 / jnp.sqrt(jnp.float32(n_in))   # PyTorch Linear default range
        w = jax.random.uniform(kw, (n_out, n_in), jnp.float32, -bound, bound)
        b = jax.random.uniform(kb, (n_out,), jnp.float32, -bound, bound)
        params.append((w, b))
    return params


def prepare_fc_params(params):
    """One-time prep: transpose W to (in, out), zero-pad dims to 128, cast bf16.

    Biases stay f32 so the epilogue runs in f32 on every chip generation.
    """
    prepped = []
    prev_out_pad = None
    for (w, b) in params:
        n_out, n_in = w.shape
        in_pad = _round_up(n_in, LANE) if prev_out_pad is None else prev_out_pad
        out_pad = _round_up(n_out, LANE)
        w_t = jnp.zeros((in_pad, out_pad), jnp.bfloat16)
        w_t = w_t.at[:n_in, :n_out].set(jnp.transpose(w).astype(jnp.bfloat16))
        b_p = jnp.zeros((1, out_pad), jnp.float32).at[:, :n_out].set(b)
        prepped.append((w_t, b_p))
        prev_out_pad = out_pad
    return prepped


def _choose_batch_tile(B, max_tile=512):
    """Fill the MXU M dimension when possible; >= 2 grid steps for v7x dual-TC."""
    if B <= 128:
        return _round_up(B, SUBLANE)                       # one small tile
    return min(max_tile, _round_up((B + 1) // 2, SUBLANE))  # >= 2 parallel steps


def make_fc_forward(layer_shapes, max_batch_tile=512):
    """Build a jitted forward: x (B, in) -> (B, out) through the fused kernel."""
    out_dim = layer_shapes[-1][1]

    def forward(x, prepped):
        B, K = x.shape
        k_pad = prepped[0][0].shape[0]          # first layer's padded input dim
        n_out_pad = prepped[-1][0].shape[1]     # last layer's padded output dim

        tb = _choose_batch_tile(B, max_batch_tile)
        b_pad = _round_up(B, tb)
        grid = (b_pad // tb,)

        # Lane-dense, bf16 LHS for the MXU; zero rows/cols are mathematically inert.
        x_p = jnp.zeros((b_pad, k_pad), jnp.bfloat16)
        x_p = x_p.at[:B, :K].set(x.astype(jnp.bfloat16))

        flat_params = []
        in_specs = [pl.BlockSpec((tb, k_pad), lambda i: (i, 0))]
        for (w_t, b_p) in prepped:
            flat_params += [w_t, b_p]
            # Constant index_map: weights/biases are DMA'd once and stay resident.
            # TODO(synk): at much larger layer widths, add
            # pipeline_mode=pl.Buffered(1) to these constant-index specs to drop
            # the unneeded second buffer and halve weight VMEM residency on v7x.
            in_specs.append(pl.BlockSpec(w_t.shape, lambda i: (0, 0)))
            in_specs.append(pl.BlockSpec(b_p.shape, lambda i: (0, 0)))

        y_pad = pl.pallas_call(
            _fused_mlp_kernel,
            out_shape=jax.ShapeDtypeStruct((b_pad, n_out_pad), jnp.float32),
            grid=grid,
            in_specs=in_specs,
            out_specs=pl.BlockSpec((tb, n_out_pad), lambda i: (i, 0)),
            compiler_params=pltpu.CompilerParams(
                # Batch tiles are independent -> megacore / v7x dual-TC sharding.
                dimension_semantics=("parallel",),
                vmem_limit_bytes=32 * 1024 * 1024,
            ),
        )(x_p, *flat_params)
        # Slice batch/lane padding back off (fuses under jit).
        return y_pad[:B, :out_dim]

    return jax.jit(forward)


# TODO(synk): encode()/decode() (flatten / reload parameters) are host-side
# parameter-management utilities, not forward-pass ops; no kernel equivalent.


if __name__ == "__main__":
    key = jax.random.PRNGKey(0)

    # topology: 32 -> 64 -> 16, matching FC(layer_shapes=[(32, 64), (64, 16)])
    layer_shapes = [(32, 64), (64, 16)]
    batch = 8

    key, kx, kp = jax.random.split(key, 3)
    x = jax.random.normal(kx, (batch, layer_shapes[0][0]), jnp.float32)
    params = init_fc_params(layer_shapes, kp)
    prepped = prepare_fc_params(params)     # one-time transpose + pad + bf16 cast

    fc_forward = make_fc_forward(layer_shapes)
    out = jax.block_until_ready(fc_forward(x, prepped))
    assert out.shape == (batch, layer_shapes[-1][1])

    # 1) Strict check vs a matched-precision reference (bf16 MXU inputs,
    #    f32 accumulation / bias / sigmoid) -- same math as the kernel.
    ref_m = x
    for (w, b) in params:
        z = jnp.dot(ref_m.astype(jnp.bfloat16), w.T.astype(jnp.bfloat16),
                    preferred_element_type=jnp.float32) + b
        ref_m = 1.0 / (1.0 + jnp.exp(-z))
    assert jnp.allclose(out, ref_m, atol=1e-4), "mismatch vs matched-precision reference"

    # 2) Semantic check vs the full-f32 reference; the only deviation is the
    #    intentional bf16 quantization of the MXU inputs.
    ref32 = x
    for (w, b) in params:
        ref32 = jax.nn.sigmoid(ref32 @ w.T + b)
    assert jnp.allclose(out, ref32, atol=5e-3), "mismatch vs f32 reference"

    print("KERNEL_OK")
</pallas_src>

<mosaic_0001>
module attributes {stable_mosaic.version = 11 : i64} {
  func.func @_fused_mlp_kernel(%arg0: i32, %arg1: memref<8x128xbf16, #tpu.memory_space<vmem>>, %arg2: memref<128x128xbf16, #tpu.memory_space<vmem>>, %arg3: memref<1x128xf32, #tpu.memory_space<vmem>>, %arg4: memref<128x128xbf16, #tpu.memory_space<vmem>>, %arg5: memref<1x128xf32, #tpu.memory_space<vmem>>, %arg6: memref<8x128xf32, #tpu.memory_space<vmem>>) attributes {dimension_semantics = [#tpu.dimension_semantics<parallel>], iteration_bounds = array<i64: 1>, scalar_prefetch = 0 : i64, scratch_operands = 0 : i64, tpu.core_type = #tpu.core_type<tc>, window_params = [{transform_indices = @transform_0, window_bounds = array<i64: 8, 128>}, {pipeline_mode = #tpu.pipeline_mode<synchronous>, transform_indices = @transform_1, window_bounds = array<i64: 128, 128>}, {pipeline_mode = #tpu.pipeline_mode<synchronous>, transform_indices = @transform_2, window_bounds = array<i64: 1, 128>}, {pipeline_mode = #tpu.pipeline_mode<synchronous>, transform_indices = @transform_3, window_bounds = array<i64: 128, 128>}, {pipeline_mode = #tpu.pipeline_mode<synchronous>, transform_indices = @transform_4, window_bounds = array<i64: 1, 128>}, {transform_indices = @transform_5, window_bounds = array<i64: 8, 128>}]} {
    %c0 = arith.constant 0 : index
    %c0_0 = arith.constant 0 : index
    %0 = vector.load %arg1[%c0, %c0_0] : memref<8x128xbf16, #tpu.memory_space<vmem>>, vector<8x128xbf16>
    %c0_1 = arith.constant 0 : index
    %c0_2 = arith.constant 0 : index
    %1 = vector.load %arg2[%c0_1, %c0_2] : memref<128x128xbf16, #tpu.memory_space<vmem>>, vector<128x128xbf16>
    %c0_3 = arith.constant 0 : index
    %c0_4 = arith.constant 0 : index
    %2 = vector.load %arg3[%c0_3, %c0_4] : memref<1x128xf32, #tpu.memory_space<vmem>>, vector<1x128xf32>
    %cst = arith.constant dense<0.000000e+00> : vector<8x128xf32>
    %3 = tpu.matmul %0, %1, %cst {dimension_numbers = #tpu.dot_dimension_numbers<[1], [0], [0], [1], [0, 0, 1, 1], [], []>} : vector<8x128xbf16>, vector<128x128xbf16>, vector<8x128xf32> -> vector<8x128xf32>
    %4 = vector.broadcast %2 : vector<1x128xf32> to vector<8x128xf32>
    %5 = arith.addf %3, %4 : vector<8x128xf32>
    %cst_5 = arith.constant 0.000000e+00 : f32
    %6 = vector.broadcast %cst_5 : f32 to vector<8x128xf32>
    %7 = arith.subf %6, %5 : vector<8x128xf32>
    %8 = math.exp %7 : vector<8x128xf32>
    %cst_6 = arith.constant 1.000000e+00 : f32
    %9 = vector.broadcast %cst_6 : f32 to vector<8x128xf32>
    %10 = arith.addf %9, %8 : vector<8x128xf32>
    %cst_7 = arith.constant 1.000000e+00 : f32
    %11 = vector.broadcast %cst_7 : f32 to vector<8x128xf32>
    %12 = arith.divf %11, %10 : vector<8x128xf32>
    %13 = arith.truncf %12 : vector<8x128xf32> to vector<8x128xbf16>
    %c0_8 = arith.constant 0 : index
    %c0_9 = arith.constant 0 : index
    %14 = vector.load %arg4[%c0_8, %c0_9] : memref<128x128xbf16, #tpu.memory_space<vmem>>, vector<128x128xbf16>
    %c0_10 = arith.constant 0 : index
    %c0_11 = arith.constant 0 : index
    %15 = vector.load %arg5[%c0_10, %c0_11] : memref<1x128xf32, #tpu.memory_space<vmem>>, vector<1x128xf32>
    %cst_12 = arith.constant dense<0.000000e+00> : vector<8x128xf32>
    %16 = tpu.matmul %13, %14, %cst_12 {dimension_numbers = #tpu.dot_dimension_numbers<[1], [0], [0], [1], [0, 0, 1, 1], [], []>} : vector<8x128xbf16>, vector<128x128xbf16>, vector<8x128xf32> -> vector<8x128xf32>
    %17 = vector.broadcast %15 : vector<1x128xf32> to vector<8x128xf32>
    %18 = arith.addf %16, %17 : vector<8x128xf32>
    %cst_13 = arith.constant 0.000000e+00 : f32
    %19 = vector.broadcast %cst_13 : f32 to vector<8x128xf32>
    %20 = arith.subf %19, %18 : vector<8x128xf32>
    %21 = math.exp %20 : vector<8x128xf32>
    %cst_14 = arith.constant 1.000000e+00 : f32
    %22 = vector.broadcast %cst_14 : f32 to vector<8x128xf32>
    %23 = arith.addf %22, %21 : vector<8x128xf32>
    %cst_15 = arith.constant 1.000000e+00 : f32
    %24 = vector.broadcast %cst_15 : f32 to vector<8x128xf32>
    %25 = arith.divf %24, %23 : vector<8x128xf32>
    %c0_16 = arith.constant 0 : index
    %c0_17 = arith.constant 0 : index
    %26 = vector.load %arg6[%c0_16, %c0_17] : memref<8x128xf32, #tpu.memory_space<vmem>>, vector<8x128xf32>
    tpu.vector_store %arg6[%c0_16, %c0_17], %25 {strides = array<i32>} : memref<8x128xf32, #tpu.memory_space<vmem>>, vector<8x128xf32>,
    return
  }
  func.func @transform_0(%arg0: i32) -> (i32, i32) {
    %c0_i32 = arith.constant 0 : i32
    %c0_i32_0 = arith.constant 0 : i32
    return %arg0, %c0_i32 : i32, i32
  }
  func.func @transform_1(%arg0: i32) -> (i32, i32) {
    %c0_i32 = arith.constant 0 : i32
    %c0_i32_0 = arith.constant 0 : i32
    %c0_i32_1 = arith.constant 0 : i32
    return %c0_i32, %c0_i32_0 : i32, i32
  }
  func.func @transform_2(%arg0: i32) -> (i32, i32) {
    %c0_i32 = arith.constant 0 : i32
    %c0_i32_0 = arith.constant 0 : i32
    %c0_i32_1 = arith.constant 0 : i32
    return %c0_i32, %c0_i32_0 : i32, i32
  }
  func.func @transform_3(%arg0: i32) -> (i32, i32) {
    %c0_i32 = arith.constant 0 : i32
    %c0_i32_0 = arith.constant 0 : i32
    %c0_i32_1 = arith.constant 0 : i32
    return %c0_i32, %c0_i32_0 : i32, i32
  }
  func.func @transform_4(%arg0: i32) -> (i32, i32) {
    %c0_i32 = arith.constant 0 : i32
    %c0_i32_0 = arith.constant 0 : i32
    %c0_i32_1 = arith.constant 0 : i32
    return %c0_i32, %c0_i32_0 : i32, i32
  }
  func.func @transform_5(%arg0: i32) -> (i32, i32) {
    %c0_i32 = arith.constant 0 : i32
    %c0_i32_0 = arith.constant 0 : i32
    return %arg0, %c0_i32 : i32, i32
  }
}

</mosaic_0001>

<llo_original>
// kernel: forward.1
$region0: #{forward.1}
  #allocation0 [shape = 'u32[]', space=smem, size = 0x4, offset = 0x4, fixed_abs, tag = 'smem constant byte address 0x4 - core index']
  #allocation1 [shape = 'u32[72,128]{1,0:T(1,128)}', space=vmem, size = 0x9000, scoped, tag = 'internal scratch']
  %s0 = inlined_call_operand.vmem [shape: bf16[8,128], index: 0, kind: input, shape index: {}]
  %s1 = inlined_call_operand.hbm [shape: bf16[128,128], index: 1, kind: input, shape index: {}]
  %s2 = inlined_call_operand.vmem [shape: f32[1,128], index: 2, kind: input, shape index: {}]
  %s3 = inlined_call_operand.hbm [shape: bf16[128,128], index: 3, kind: input, shape index: {}]
  %s4 = inlined_call_operand.vmem [shape: f32[1,128], index: 4, kind: input, shape index: {}]
  %s5 = inlined_call_operand.hbm [shape: f32[8,128], index: 5, kind: output, shape index: {}]
  %s6 = sld [smem:[#allocation0]]
  $region38: #{forward.1} parent=0
    _
  %s8 = ssub.s32 1, %s6
  %s9 = scalar_select 0, %s8, %s6
  $region1: #{forward.1} parent=0
    #allocation2 [shape = 'u8[32768]{0}', space=vmem, size = 0x8000, scoped, tag = 'input window, operand 1, single buffered']
    #allocation3 [shape = 's32[1]{0}', space=sflag, size = 0x4, scoped, tag = 'scoped memory for forward.1']
    #allocation4 [shape = 's32[1]{0}', space=sflag, size = 0x4, scoped, tag = 'scoped memory for forward.1']
    #allocation5 [shape = 'u8[32768]{0}', space=vmem, size = 0x8000, scoped, tag = 'input window, operand 3, single buffered']
    #allocation6 [shape = 's32[1]{0}', space=sflag, size = 0x4, scoped, tag = 'scoped memory for forward.1']
    #allocation7 [shape = 'u8[4096]{0}', space=vmem, size = 0x1000, scoped, tag = 'output window, operand 0, single buffered']
    %10 = vsyncpa [#allocation3], 0
    %11 = vsyncpa [#allocation6], 0
    %12 = vsyncpa [#allocation4], 0
    // Predicated region
    $region2: #{forward.1} parent=1 // pred_check
      _
    $region3: #{forward.1} parent=1 // pred_check_branch
      %14 = sbr.rel (0) target = $region5
    $region4: #{forward.1} parent=1 // pred_region
      _
    $region5: #{forward.1} parent=1 // pred_fallthru
      _
    // Predicated region
    $region6: #{forward.1} parent=1 // pred_check
      _
    $region7: #{forward.1} parent=1 // pred_check_branch
      %16 = sbr.rel (0) target = $region9
    $region8: #{forward.1} parent=1 // pred_region
      %18 = vsyncadd [#allocation3], 0
      %s19 = sshll.u32 %s1, 4
      %s20 = int_to_ptr.hbm [resolvable:$true] %s19
      %s21 = sshll.u32 [#allocation2], 4
      %s22 = int_to_ptr.vmem [resolvable:$true] %s21
      %27 = dma.hbm_to_vmem [thread:$0]  %s20, 1024, %s22, [#allocation3], 64, 64, 4
    $region9: #{forward.1} parent=1 // pred_fallthru
      _
    // Predicated region
    $region10: #{forward.1} parent=1 // pred_check
      _
    $region11: #{forward.1} parent=1 // pred_check_branch
      %29 = sbr.rel (0) target = $region13
    $region12: #{forward.1} parent=1 // pred_region
      _
    $region13: #{forward.1} parent=1 // pred_fallthru
      _
    // Predicated region
    $region14: #{forward.1} parent=1 // pred_check
      _
    $region15: #{forward.1} parent=1 // pred_check_branch
      %31 = sbr.rel (0) target = $region17
    $region16: #{forward.1} parent=1 // pred_region
      %33 = vsyncadd [#allocation6], 0
      %s34 = sshll.u32 %s3, 4
      %s35 = int_to_ptr.hbm [resolvable:$true] %s34
      %s36 = sshll.u32 [#allocation5], 4
      %s37 = int_to_ptr.vmem [resolvable:$true] %s36
      %42 = dma.hbm_to_vmem [thread:$0]  %s35, 1024, %s37, [#allocation6], 64, 64, 4
    $region17: #{forward.1} parent=1 // pred_fallthru
      _
    // Predicated region
    $region18: #{forward.1} parent=1 // pred_check
      _
    $region19: #{forward.1} parent=1 // pred_check_branch
      %44 = sbr.rel (0) target = $region21
    $region20: #{forward.1} parent=1 // pred_region
      _
    $region21: #{forward.1} parent=1 // pred_fallthru
      _
    // Predicated region
    $region22: #{forward.1} parent=1 // pred_check
      _
    $region23: #{forward.1} parent=1 // pred_check_branch
      %46 = sbr.rel (0) target = $region25
    $region24: #{forward.1} parent=1 // pred_region
      %48 = dma.done [#allocation3], 1024
    $region25: #{forward.1} parent=1 // pred_fallthru
      _
    // Predicated region
    $region26: #{forward.1} parent=1 // pred_check
      _
    $region27: #{forward.1} parent=1 // pred_check_branch
      %50 = sbr.rel (0) target = $region29
    $region28: #{forward.1} parent=1 // pred_region
      %52 = dma.done [#allocation6], 1024
    $region29: #{forward.1} parent=1 // pred_fallthru
      _
    %v53 = vld [vmem:[%s0] sm:$0xf]
    %v54 = vld [vmem:[#allocation2] sm:$0xf]
    %v55 = vld [vmem:[#allocation2 + $0x4] sm:$0xf]
    %v56 = vld [vmem:[#allocation2 + $0x8] sm:$0xf]
    %v57 = vld [vmem:[#allocation2 + $0xc] sm:$0xf]
    %v58 = vld [vmem:[#allocation2 + $0x10] sm:$0xf]
    %v59 = vld [vmem:[#allocation2 + $0x14] sm:$0xf]
    %v60 = vld [vmem:[#allocation2 + $0x18] sm:$0xf]
    %v61 = vld [vmem:[#allocation2 + $0x1c] sm:$0xf]
    %v62 = vld [vmem:[#allocation2 + $0x20] sm:$0xf]
    %v63 = vld [vmem:[#allocation2 + $0x24] sm:$0xf]
    %v64 = vld [vmem:[#allocation2 + $0x28] sm:$0xf]
    %v65 = vld [vmem:[#allocation2 + $0x2c] sm:$0xf]
    %v66 = vld [vmem:[#allocation2 + $0x30] sm:$0xf]
    %v67 = vld [vmem:[#allocation2 + $0x34] sm:$0xf]
    %v68 = vld [vmem:[#allocation2 + $0x38] sm:$0xf]
    %v69 = vld [vmem:[#allocation2 + $0x3c] sm:$0xf]
    %v70 = vld [vmem:[%s2] sm:$0x1]
    %v72 = vperm.slane %v70, 0
    %v90 = vunpack.c.l.b16 %v54
    %v91 = vunpack.c.l.b16 %v55
    %v92 = vunpack.c.l.b16 %v56
    %v93 = vunpack.c.l.b16 %v57
    %v94 = vunpack.c.l.b16 %v58
    %v95 = vunpack.c.l.b16 %v59
    %v96 = vunpack.c.l.b16 %v60
    %v97 = vunpack.c.l.b16 %v61
    %v98 = vunpack.c.l.b16 %v62
    %v99 = vunpack.c.l.b16 %v63
    %v100 = vunpack.c.l.b16 %v64
    %v101 = vunpack.c.l.b16 %v65
    %v102 = vunpack.c.l.b16 %v66
    %v103 = vunpack.c.l.b16 %v67
    %v104 = vunpack.c.l.b16 %v68
    %v105 = vunpack.c.l.b16 %v69
    %v106 = vpack.c.b16 %v91, %v90
    %v107 = vpack.c.b16 %v93, %v92
    %v108 = vpack.c.b16 %v95, %v94
    %v109 = vpack.c.b16 %v97, %v96
    %v110 = vpack.c.b16 %v99, %v98
    %v111 = vpack.c.b16 %v101, %v100
    %v112 = vpack.c.b16 %v103, %v102
    %v113 = vpack.c.b16 %v105, %v104
    %122 = vmatpush.bf16.msra.mxu0 %v113
    %123 = vmatpush.bf16.msra.mxu0 %v112
    %124 = vmatpush.bf16.msra.mxu0 %v111
    %125 = vmatpush.bf16.msra.mxu0 %v110
    %126 = vmatpush.bf16.msra.mxu0 %v109
    %127 = vmatpush.bf16.msra.mxu0 %v108
    %128 = vmatpush.bf16.msra.mxu0 %v107
    %129 = vmatpush.bf16.msra.mxu0 %v106
    %130 = vmatmul.bf16.gmra.mxu0 %v53
    %v131 = vpop.f32.mrf.mxu0
    %v132 = vadd.f32 %v72, %v131
    %v133 = vpop.f32.mrf.mxu0
    %134 = vdwg.mxu0
    %v135 = vsub.f32 0.0, %v132
    %v136 = vmul.f32 %v135, 1.442695
    %v137 = vpow.pop %v136
    %v138 = vadd.f32 %v137, 1.0
    %v139 = vrcp.pop %v138
    %v140 = vmul.f32 %v138, %v139
    %v141 = vsub.f32 1.0, %v140
    %v142 = vmul.f32 %v139, %v141
    %v143 = vadd.f32 %v139, %v142
    %vm144 = vweird.f32 %v138
    %vm145 = vweird.f32 %v139
    %vm146 = vmor %vm144, %vm145
    %v147 = vsel %vm146, %v139, %v143
    %v148 = vand.u32 2147483647, %v138
    %vm149 = vcmp.eq.f32.partialorder %v148, 8.507059e+37
    %v150 = vand.u32 %v138, 2147483648
    %v151 = vor.u32 1.1754944e-38, %v150
    %v152 = vsel %vm149, %v151, %v147
    %v153 = vmul.f32 1.0, %v152
    %v154 = vpack.c.bf16 %v153, %v153
    %v155 = vld [vmem:[#allocation5] sm:$0xf]
    %v156 = vld [vmem:[#allocation5 + $0x4] sm:$0xf]
    %v157 = vld [vmem:[#allocation5 + $0x8] sm:$0xf]
    %v158 = vld [vmem:[#allocation5 + $0xc] sm:$0xf]
    %v159 = vld [vmem:[#allocation5 + $0x10] sm:$0xf]
    %v160 = vld [vmem:[#allocation5 + $0x14] sm:$0xf]
    %v161 = vld [vmem:[#allocation5 + $0x18] sm:$0xf]
    %v162 = vld [vmem:[#allocation5 + $0x1c] sm:$0xf]
    %v163 = vld [vmem:[#allocation5 + $0x20] sm:$0xf]
    %v164 = vld [vmem:[#allocation5 + $0x24] sm:$0xf]
    %v165 = vld [vmem:[#allocation5 + $0x28] sm:$0xf]
    %v166 = vld [vmem:[#allocation5 + $0x2c] sm:$0xf]
    %v167 = vld [vmem:[#allocation5 + $0x30] sm:$0xf]
    %v168 = vld [vmem:[#allocation5 + $0x34] sm:$0xf]
    %v169 = vld [vmem:[#allocation5 + $0x38] sm:$0xf]
    %v170 = vld [vmem:[#allocation5 + $0x3c] sm:$0xf]
    %v171 = vld [vmem:[%s4] sm:$0x1]
    %v173 = vperm.slane %v171, 0
    %v191 = vunpack.c.l.b16 %v155
    %v192 = vunpack.c.l.b16 %v156
    %v193 = vunpack.c.l.b16 %v157
    %v194 = vunpack.c.l.b16 %v158
    %v195 = vunpack.c.l.b16 %v159
    %v196 = vunpack.c.l.b16 %v160
    %v197 = vunpack.c.l.b16 %v161
    %v198 = vunpack.c.l.b16 %v162
    %v199 = vunpack.c.l.b16 %v163
    %v200 = vunpack.c.l.b16 %v164
    %v201 = vunpack.c.l.b16 %v165
    %v202 = vunpack.c.l.b16 %v166
    %v203 = vunpack.c.l.b16 %v167
    %v204 = vunpack.c.l.b16 %v168
    %v205 = vunpack.c.l.b16 %v169
    %v206 = vunpack.c.l.b16 %v170
    %v207 = vpack.c.b16 %v192, %v191
    %v208 = vpack.c.b16 %v194, %v193
    %v209 = vpack.c.b16 %v196, %v195
    %v210 = vpack.c.b16 %v198, %v197
    %v211 = vpack.c.b16 %v200, %v199
    %v212 = vpack.c.b16 %v202, %v201
    %v213 = vpack.c.b16 %v204, %v203
    %v214 = vpack.c.b16 %v206, %v205
    %223 = vmatpush.bf16.msra.mxu0 %v214
    %224 = vmatpush.bf16.msra.mxu0 %v213
    %225 = vmatpush.bf16.msra.mxu0 %v212
    %226 = vmatpush.bf16.msra.mxu0 %v211
    %227 = vmatpush.bf16.msra.mxu0 %v210
    %228 = vmatpush.bf16.msra.mxu0 %v209
    %229 = vmatpush.bf16.msra.mxu0 %v208
    %230 = vmatpush.bf16.msra.mxu0 %v207
    %231 = vmatmul.bf16.gmra.mxu0 %v154
    %v232 = vpop.f32.mrf.mxu0
    %v233 = vadd.f32 %v173, %v232
    %v234 = vpop.f32.mrf.mxu0
    %235 = vdwg.mxu0
    %v236 = vsub.f32 0.0, %v233
    %v237 = vmul.f32 %v236, 1.442695
    %v238 = vpow.pop %v237
    %v239 = vadd.f32 %v238, 1.0
    %v240 = vrcp.pop %v239
    %v241 = vmul.f32 %v239, %v240
    %v242 = vsub.f32 1.0, %v241
    %v243 = vmul.f32 %v240, %v242
    %v244 = vadd.f32 %v240, %v243
    %vm245 = vweird.f32 %v239
    %vm246 = vweird.f32 %v240
    %vm247 = vmor %vm245, %vm246
    %v248 = vsel %vm247, %v240, %v244
    %v249 = vand.u32 2147483647, %v239
    %vm250 = vcmp.eq.f32.partialorder %v249, 8.507059e+37
    %v251 = vand.u32 %v239, 2147483648
    %v252 = vor.u32 1.1754944e-38, %v251
    %v253 = vsel %vm250, %v252, %v248
    %v254 = vmul.f32 1.0, %v253
    %255 = vst [vmem:[#allocation7] sm:$0xff] %v254
    // Predicated region
    $region30: #{forward.1} parent=1 // pred_check
      _
    $region31: #{forward.1} parent=1 // pred_check_branch
      %257 = sbr.rel (0) target = $region33
    $region32: #{forward.1} parent=1 // pred_region
      %259 = vsyncadd [#allocation4], 0
      %s261 = sshll.u32 [#allocation7], 4
      %s262 = int_to_ptr.vmem [resolvable:$true] %s261
      %s263 = sshll.u32 %s5, 4
      %s264 = int_to_ptr.hbm [resolvable:$true] %s263
      %266 = dma.vmem_to_hbm [thread:$0]  %s262, 128, %s264, [#allocation4]
    $region33: #{forward.1} parent=1 // pred_fallthru
      _
    // Predicated region
    $region34: #{forward.1} parent=1 // pred_check
      _
    $region35: #{forward.1} parent=1 // pred_check_branch
      %268 = sbr.rel (0) target = $region37
    $region36: #{forward.1} parent=1 // pred_region
      %270 = dma.done [#allocation4], 128
    $region37: #{forward.1} parent=1 // pred_fallthru
      _
    %271 = vsyncpa [#allocation3], 1
    %272 = vsyncpa [#allocation6], 1
    %273 = vsyncpa [#allocation4], 1

</llo_original>
